<compile_context>
chip_gen: v5e
topology: v5e:2x2
jax: 0.10.0
libtpu: 0.0.40
codegen_flags: <defaults>
</compile_context>

<pallas_src>
import functools

import jax
import jax.numpy as jnp
from jax.experimental import pallas as pl
from jax.experimental.pallas import tpu as pltpu

_LANE_CANDIDATES = (512, 256, 128)   # widest lane-dense layout that divides n
_CHUNK_ROWS = 512                    # per-step row chunk -> bounded temporaries


def _device_config():
    """Returns (vmem_capacity_bytes, num_tensorcores, default_tile_bytes)."""
    kind = ""
    try:
        kind = jax.devices()[0].device_kind.lower()
    except Exception:
        pass
    vmem_cap = None
    try:
        vmem_cap = int(pltpu.get_tpu_info().vmem_capacity_bytes)
    except Exception:
        pass
    if "v7" in kind:
        # 64 MiB VMEM per TC, 2 TCs, 3.2 TB/s HBM: mid-size tiles, 2-way split.
        return (min(vmem_cap or (64 << 20), 64 << 20), 2, 6 << 20)
    if "v6" in kind:
        return (vmem_cap or (128 << 20), 1, 8 << 20)
    if "v5" in kind:
        return (vmem_cap or (128 << 20), 1, 8 << 20)
    # Unknown chip: conservative defaults.
    return (vmem_cap or (64 << 20), 1, 4 << 20)


def _mse_kernel(x_ref, y_ref, o_ref, acc_ref, *,
                n_valid_rows, tile_rows, chunk_rows, lanes,
                tiles_per_core, fold_rows, edge_possible):
    c = pl.program_id(0)          # core-split axis ("parallel")
    k = pl.program_id(1)          # row-tile reduction axis ("arbitrary")

    @pl.when(k == 0)
    def _init():
        acc_ref[...] = jnp.zeros_like(acc_ref)

    tile_idx = c * tiles_per_core + k      # unclamped global tile index
    row0 = tile_idx * tile_rows

    num_full = tile_rows // chunk_rows
    rem_rows = tile_rows - num_full * chunk_rows   # multiple of 8 when fold_rows

    def add_rows(r, nrows, masked):
        # Row-chunked squared-diff fold: keeps live f32 temporaries at
        # ~3 x (chunk_rows x lanes) regardless of how big the DMA tile is.
        xd = x_ref[pl.ds(r, nrows), :].astype(jnp.float32)
        yd = y_ref[pl.ds(r, nrows), :].astype(jnp.float32)
        d = xd - yd
        sq = d * d
        if masked:
            # Mask applied AFTER squaring so garbage rows (even NaN/Inf) never
            # reach the accumulator.
            rid = row0 + r + jax.lax.broadcasted_iota(jnp.int32, sq.shape, 0)
            sq = jnp.where(rid < n_valid_rows, sq, 0.0)
        if fold_rows:
            # Pure-VPU partial reduction into the (8, lanes) accumulator; the
            # expensive cross-lane reduce is deferred to the final step.
            acc_ref[...] += sq.reshape(nrows // 8, 8, lanes).sum(axis=0)
        else:
            acc_ref[...] += sq

    def accumulate(masked):
        if num_full == 1:
            add_rows(0, chunk_rows, masked)
        elif num_full > 1:
            def body(i, carry):
                r = pl.multiple_of(i * chunk_rows, chunk_rows)
                add_rows(r, chunk_rows, masked)
                return carry
            jax.lax.fori_loop(0, num_full, body, 0,
                              unroll=min(num_full, 8))
        if rem_rows > 0:
            add_rows(num_full * chunk_rows, rem_rows, masked)

    if edge_possible:
        has_invalid = row0 + tile_rows > n_valid_rows
        all_invalid = row0 >= n_valid_rows

        # Interior tiles: no mask cost at all.
        @pl.when(jnp.logical_not(has_invalid))
        def _interior():
            accumulate(masked=False)

        # Exactly one edge tile (per core) pays the iota/compare/select.
        @pl.when(jnp.logical_and(has_invalid, jnp.logical_not(all_invalid)))
        def _edge():
            accumulate(masked=True)
        # Fully-invalid (clamped duplicate) tiles contribute nothing.
    else:
        accumulate(masked=False)

    @pl.when(k == tiles_per_core - 1)
    def _finalize():
        o_ref[0, 0] = jnp.sum(acc_ref[...])


def color_mse_loss(inputs, targets, *, tile_bytes=None, num_core_splits=None):
    """MSE with 'mean' reduction over all elements (== nn.MSELoss(reduction='mean'))."""
    assert inputs.shape == targets.shape, "MSELoss requires matching shapes"
    n = inputs.size

    vmem_cap, num_tc, default_tile_bytes = _device_config()
    if tile_bytes is None:
        tile_bytes = default_tile_bytes
    if num_core_splits is None:
        num_core_splits = num_tc

    xf = inputs.reshape(-1)
    yf = targets.reshape(-1)

    # Pick the widest lane count that divides n -> copy-free reshape to [M, W].
    lanes = None
    for cand in _LANE_CANDIDATES:
        if n % cand == 0:
            lanes = cand
            break

    tail_sq = jnp.float32(0.0)
    if lanes is None:
        # Unaligned n: kernel covers the 128-aligned prefix; the (<128-element)
        # tail is summed in plain JAX. No full-array pad copy through HBM.
        lanes = 128
        m = n // lanes
        n_main = m * lanes
        tail_sq = jnp.sum((xf[n_main:].astype(jnp.float32)
                           - yf[n_main:].astype(jnp.float32)) ** 2)
        xf = xf[:n_main]
        yf = yf[:n_main]
    else:
        m = n // lanes

    if m == 0:
        return tail_sq / jnp.float32(n)

    x2d = xf.reshape(m, lanes)
    y2d = yf.reshape(m, lanes)

    # Row-tile size: ~tile_bytes per input tile, a multiple of 8 rows.
    bytes_per_row = lanes * x2d.dtype.itemsize
    target_rows = max(8, (tile_bytes // bytes_per_row) // 8 * 8)
    if m < 8:
        tile_rows = m              # tiny single tile, no row folding possible
        fold_rows = False
        chunk_rows = tile_rows
    else:
        tile_rows = int(min(target_rows, (m // 8) * 8))
        fold_rows = True
        chunk_rows = min(tile_rows, _CHUNK_ROWS)

    tiles_total = pl.cdiv(m, tile_rows)
    splits = num_core_splits if (num_core_splits > 1
                                 and tiles_total >= num_core_splits) else 1
    tiles_per_core = pl.cdiv(tiles_total, splits)

    acc_rows = 8 if fold_rows else tile_rows
    needs_clamp = splits * tiles_per_core != tiles_total
    edge_possible = (m % tile_rows != 0) or needs_clamp

    def in_index_map(c, k):
        idx = c * tiles_per_core + k
        if needs_clamp:
            # Keep the DMA in-bounds; the duplicated tile is skipped in-kernel.
            idx = jnp.minimum(idx, tiles_total - 1)
        return (idx, 0)

    kernel = functools.partial(
        _mse_kernel,
        n_valid_rows=m,
        tile_rows=tile_rows,
        chunk_rows=chunk_rows,
        lanes=lanes,
        tiles_per_core=tiles_per_core,
        fold_rows=fold_rows,
        edge_possible=edge_possible,
    )

    # VMEM budget: 2 inputs x 2 pipeline buffers x tile, plus chunk-sized f32
    # temporaries and the small accumulator; headroom keeps Mosaic comfortable.
    tile_in_bytes = tile_rows * lanes * x2d.dtype.itemsize
    vmem_limit = int(min(vmem_cap, max(32 << 20, 4 * tile_in_bytes + (16 << 20))))

    cost = pl.CostEstimate(
        flops=3 * m * lanes,              # sub + mul + add per element
        transcendentals=0,
        bytes_accessed=2 * m * lanes * x2d.dtype.itemsize,
    )

    partials = pl.pallas_call(
        kernel,
        out_shape=jax.ShapeDtypeStruct((splits, 1), jnp.float32),
        grid_spec=pltpu.PrefetchScalarGridSpec(
            num_scalar_prefetch=0,
            grid=(splits, tiles_per_core),
            in_specs=[
                pl.BlockSpec((tile_rows, lanes), in_index_map),
                pl.BlockSpec((tile_rows, lanes), in_index_map),
            ],
            out_specs=pl.BlockSpec((1, 1), lambda c, k: (c, 0),
                                   memory_space=pltpu.SMEM),
            scratch_shapes=[pltpu.VMEM((acc_rows, lanes), jnp.float32)],
        ),
        # TODO(synk): on v7x, verify in the Mosaic dump that the leading
        # "parallel" axis is actually sharded across both TensorCores; if not,
        # switch it to pltpu.CORE_PARALLEL.  pl.Buffered(3) on the input specs
        # is a further v7x-only knob if DMA is still exposed after tiling.
        compiler_params=pltpu.CompilerParams(
            dimension_semantics=("parallel", "arbitrary"),
            vmem_limit_bytes=vmem_limit,
        ),
        cost_estimate=cost,
    )(x2d, y2d)

    return (jnp.sum(partials) + tail_sq) / jnp.float32(n)


if __name__ == "__main__":
    key = jax.random.PRNGKey(0)
    k1, k2, k3, k4 = jax.random.split(key, 4)

    # Main test: NCHW, like the PyTorch module's inputs.
    shape = (2, 4, 16, 16)
    inputs = jax.random.normal(k1, shape, dtype=jnp.float32)
    targets = jax.random.normal(k2, shape, dtype=jnp.float32)

    loss = color_mse_loss(inputs, targets)
    loss = jax.block_until_ready(loss)
    ref = jnp.mean((inputs - targets) ** 2)
    assert jnp.allclose(loss, ref, rtol=1e-5, atol=1e-6), (loss, ref)

    # Second test: odd shape + tiny tile override + forced 2-way split to
    # exercise the unaligned-tail path, multi-tile edge masking, and the
    # clamped-duplicate-tile skip (serial-but-correct on single-TC chips).
    shape2 = (1, 2, 50, 50)
    a = jax.random.normal(k3, shape2, dtype=jnp.float32)
    b = jax.random.normal(k4, shape2, dtype=jnp.float32)
    loss2 = color_mse_loss(a, b, tile_bytes=8 * 1024, num_core_splits=2)
    loss2 = jax.block_until_ready(loss2)
    ref2 = jnp.mean((a - b) ** 2)
    assert jnp.allclose(loss2, ref2, rtol=1e-5, atol=1e-6), (loss2, ref2)

    print("KERNEL_OK")
</pallas_src>

<mosaic_0001>
module attributes {stable_mosaic.version = 11 : i64} {
  func.func @_mse_kernel(%arg0: i32, %arg1: i32, %arg2: memref<4x512xf32, #tpu.memory_space<vmem>>, %arg3: memref<4x512xf32, #tpu.memory_space<vmem>>, %arg4: memref<1x1xf32, #tpu.memory_space<smem>>, %arg5: memref<4x512xf32, #tpu.memory_space<vmem>>) attributes {dimension_semantics = [#tpu.dimension_semantics<parallel>, #tpu.dimension_semantics<arbitrary>], iteration_bounds = array<i64: 1, 1>, scalar_prefetch = 0 : i64, scratch_operands = 1 : i64, tpu.core_type = #tpu.core_type<tc>, window_params = [{transform_indices = @transform_0, window_bounds = array<i64: 4, 512>}, {transform_indices = @transform_1, window_bounds = array<i64: 4, 512>}, {transform_indices = @transform_2, window_bounds = array<i64: 1, 1>}]} {
    %c0_i32 = arith.constant 0 : i32
    %0 = arith.cmpi eq, %arg1, %c0_i32 : i32
    %1 = arith.extui %0 : i1 to i32
    %c0_i32_0 = arith.constant 0 : i32
    %2 = arith.cmpi ne, %1, %c0_i32_0 : i32
    scf.if %2 {
      %cst = arith.constant 0.000000e+00 : f32
      %13 = vector.broadcast %cst : f32 to vector<4x512xf32>
      %c0_10 = arith.constant 0 : index
      %c0_11 = arith.constant 0 : index
      %14 = vector.load %arg5[%c0_10, %c0_11] : memref<4x512xf32, #tpu.memory_space<vmem>>, vector<4x512xf32>
      tpu.vector_store %arg5[%c0_10, %c0_11], %13 {strides = array<i32>} : memref<4x512xf32, #tpu.memory_space<vmem>>, vector<4x512xf32>,
    } else {
    }
    %c0 = arith.constant 0 : index
    %c0_1 = arith.constant 0 : index
    %3 = vector.load %arg2[%c0, %c0_1] : memref<4x512xf32, #tpu.memory_space<vmem>>, vector<4x512xf32>
    %c0_2 = arith.constant 0 : index
    %c0_3 = arith.constant 0 : index
    %4 = vector.load %arg3[%c0_2, %c0_3] : memref<4x512xf32, #tpu.memory_space<vmem>>, vector<4x512xf32>
    %5 = arith.subf %3, %4 : vector<4x512xf32>
    %6 = arith.mulf %5, %5 : vector<4x512xf32>
    %c0_4 = arith.constant 0 : index
    %c0_5 = arith.constant 0 : index
    %7 = vector.load %arg5[%c0_4, %c0_5] : memref<4x512xf32, #tpu.memory_space<vmem>>, vector<4x512xf32>
    %8 = arith.addf %7, %6 : vector<4x512xf32>
    %c0_6 = arith.constant 0 : index
    %c0_7 = arith.constant 0 : index
    %9 = vector.load %arg5[%c0_6, %c0_7] : memref<4x512xf32, #tpu.memory_space<vmem>>, vector<4x512xf32>
    tpu.vector_store %arg5[%c0_6, %c0_7], %8 {strides = array<i32>} : memref<4x512xf32, #tpu.memory_space<vmem>>, vector<4x512xf32>,
    %c0_i32_8 = arith.constant 0 : i32
    %10 = arith.cmpi eq, %arg1, %c0_i32_8 : i32
    %11 = arith.extui %10 : i1 to i32
    %c0_i32_9 = arith.constant 0 : i32
    %12 = arith.cmpi ne, %11, %c0_i32_9 : i32
    scf.if %12 {
      %c0_10 = arith.constant 0 : index
      %c0_11 = arith.constant 0 : index
      %13 = vector.load %arg5[%c0_10, %c0_11] : memref<4x512xf32, #tpu.memory_space<vmem>>, vector<4x512xf32>
      %14 = vector.shape_cast %13 : vector<4x512xf32> to vector<1x4x512xf32>
      %cst = arith.constant dense<0.000000e+00> : vector<1xf32>
      %15 = vector.multi_reduction <add>, %14, %cst [1, 2] : vector<1x4x512xf32> to vector<1xf32>
      %16 = vector.shape_cast %15 : vector<1xf32> to vector<1x1x1xf32>
      %17 = vector.extract %16[0, 0, 0] : f32 from vector<1x1x1xf32>
      %c0_12 = arith.constant 0 : index
      %c0_13 = arith.constant 0 : index
      %18 = memref.load %arg4[%c0_12, %c0_13] : memref<1x1xf32, #tpu.memory_space<smem>>
      memref.store %17, %arg4[%c0_12, %c0_13] : memref<1x1xf32, #tpu.memory_space<smem>>
    } else {
    }
    return
  }
  func.func @transform_0(%arg0: i32, %arg1: i32) -> (i32, i32) {
    %c1_i32 = arith.constant 1 : i32
    %0 = arith.muli %arg0, %c1_i32 : i32
    %1 = arith.addi %0, %arg1 : i32
    %c0_i32 = arith.constant 0 : i32
    %c0_i32_0 = arith.constant 0 : i32
    return %1, %c0_i32 : i32, i32
  }
  func.func @transform_1(%arg0: i32, %arg1: i32) -> (i32, i32) {
    %c1_i32 = arith.constant 1 : i32
    %0 = arith.muli %arg0, %c1_i32 : i32
    %1 = arith.addi %0, %arg1 : i32
    %c0_i32 = arith.constant 0 : i32
    %c0_i32_0 = arith.constant 0 : i32
    return %1, %c0_i32 : i32, i32
  }
  func.func @transform_2(%arg0: i32, %arg1: i32) -> (i32, i32) {
    %c0_i32 = arith.constant 0 : i32
    %c0_i32_0 = arith.constant 0 : i32
    return %arg0, %c0_i32 : i32, i32
  }
}

</mosaic_0001>

<llo_original>
// kernel: tpu_custom_call.1
$region0: #{tpu_custom_call.1}
  #allocation0 [shape = 'u32[]', space=smem, size = 0x4, offset = 0x4, fixed_abs, tag = 'smem constant byte address 0x4 - core index']
  #allocation1 [shape = 'u32[72,128]{1,0:T(1,128)}', space=vmem, size = 0x9000, scoped, tag = 'internal scratch']
  #allocation2 [shape = 'f32[4,512]{1,0:T(4,128)}', space=vmem, size = 0x2000, scoped, tag = 'scratch operand']
  %s0 = inlined_call_operand.hbm [shape: f32[4,512], index: 0, kind: input, shape index: {}]
  %s1 = inlined_call_operand.hbm [shape: f32[4,512], index: 1, kind: input, shape index: {}]
  %s2 = inlined_call_operand.hbm [shape: f32[1,1], index: 2, kind: output, shape index: {}]
  %s3 = sld [smem:[#allocation0]]
  $region34: #{tpu_custom_call.1} parent=0
    _
  %s5 = ssub.s32 1, %s3
  %s6 = scalar_select 0, %s5, %s3
  $region1: #{tpu_custom_call.1} parent=0
    #allocation3 [shape = 'u8[8192]{0}', space=vmem, size = 0x2000, scoped, tag = 'input window, operand 0, single buffered']
    #allocation4 [shape = 's32[1]{0}', space=sflag, size = 0x4, scoped, tag = 'scoped memory for tpu_custom_call.1']
    #allocation5 [shape = 's32[1]{0}', space=sflag, size = 0x4, scoped, tag = 'scoped memory for tpu_custom_call.1']
    #allocation6 [shape = 'u8[8192]{0}', space=vmem, size = 0x2000, scoped, tag = 'input window, operand 1, single buffered']
    #allocation7 [shape = 's32[1]{0}', space=sflag, size = 0x4, scoped, tag = 'scoped memory for tpu_custom_call.1']
    #allocation8 [shape = 'u8[512]{0}', space=smem, size = 0x200, scoped, tag = 'output window, operand 0, single buffered']
    %7 = vsyncpa [#allocation4], 0
    %8 = vsyncpa [#allocation7], 0
    %9 = vsyncpa [#allocation5], 0
    // Predicated region
    $region2: #{tpu_custom_call.1} parent=1 // pred_check
      _
    $region3: #{tpu_custom_call.1} parent=1 // pred_check_branch
      %11 = sbr.rel (0) target = $region5
    $region4: #{tpu_custom_call.1} parent=1 // pred_region
      %s12 = sadd.s32 0, 0
      %14 = vsyncadd [#allocation4], 0
      %s15 = smul.addr %s12, 4
      %s16 = smul.addr %s15, 4
      %s17 = scalar_lea.hbm %s0, %s16
      %s19 = sshll.u32 %s17, 4
      %s20 = int_to_ptr.hbm [resolvable:$true] %s19
      %s21 = sshll.u32 [#allocation3], 4
      %s22 = int_to_ptr.vmem [resolvable:$true] %s21
      %24 = dma.hbm_to_vmem [thread:$0]  %s20, 256, %s22, [#allocation4]
    $region5: #{tpu_custom_call.1} parent=1 // pred_fallthru
      _
    // Predicated region
    $region6: #{tpu_custom_call.1} parent=1 // pred_check
      _
    $region7: #{tpu_custom_call.1} parent=1 // pred_check_branch
      %26 = sbr.rel (0) target = $region9
    $region8: #{tpu_custom_call.1} parent=1 // pred_region
      %s27 = sadd.s32 0, 0
      %29 = vsyncadd [#allocation7], 0
      %s30 = smul.addr %s27, 4
      %s31 = smul.addr %s30, 4
      %s32 = scalar_lea.hbm %s1, %s31
      %s34 = sshll.u32 %s32, 4
      %s35 = int_to_ptr.hbm [resolvable:$true] %s34
      %s36 = sshll.u32 [#allocation6], 4
      %s37 = int_to_ptr.vmem [resolvable:$true] %s36
      %39 = dma.hbm_to_vmem [thread:$0]  %s35, 256, %s37, [#allocation7]
    $region9: #{tpu_custom_call.1} parent=1 // pred_fallthru
      _
    // Predicated region
    $region10: #{tpu_custom_call.1} parent=1 // pred_check
      _
    $region11: #{tpu_custom_call.1} parent=1 // pred_check_branch
      %41 = sbr.rel (0) target = $region13
    $region12: #{tpu_custom_call.1} parent=1 // pred_region
      %43 = dma.done [#allocation4], 256
    $region13: #{tpu_custom_call.1} parent=1 // pred_fallthru
      _
    // Predicated region
    $region14: #{tpu_custom_call.1} parent=1 // pred_check
      _
    $region15: #{tpu_custom_call.1} parent=1 // pred_check_branch
      %45 = sbr.rel (0) target = $region17
    $region16: #{tpu_custom_call.1} parent=1 // pred_region
      %47 = dma.done [#allocation7], 256
    $region17: #{tpu_custom_call.1} parent=1 // pred_fallthru
      _
    %s48 = sadd.s32 0, 0
    %s49 = sadd.s32 0, 0
    %p50 = scmp.eq.s32.totalorder 0, 0
    // Predicated region
    $region18: #{tpu_custom_call.1} parent=1 // pred_check
      %p51 = pneg %p50
    $region19: #{tpu_custom_call.1} parent=1 // pred_check_branch
      %53 = sbr.rel (%p51) target = $region21
    $region20: #{tpu_custom_call.1} parent=1 // pred_region
      %54 = vst [vmem:[#allocation2] sm:$0xff] 0.0
      %55 = vst [vmem:[#allocation2 + $0x8] sm:$0xff] 0.0
    $region21: #{tpu_custom_call.1} parent=1 // pred_fallthru
      _
    %v56 = vld [vmem:[#allocation3] sm:$0xff]
    %v57 = vld [vmem:[#allocation3 + $0x8] sm:$0xff]
    %v58 = vld [vmem:[#allocation6] sm:$0xff]
    %v59 = vld [vmem:[#allocation6 + $0x8] sm:$0xff]
    %v60 = vsub.f32 %v56, %v58
    %v61 = vsub.f32 %v57, %v59
    %v62 = vmul.f32 %v60, %v60
    %v63 = vmul.f32 %v61, %v61
    %v64 = vld [vmem:[#allocation2] sm:$0xff]
    %v65 = vld [vmem:[#allocation2 + $0x8] sm:$0xff]
    %v66 = vadd.f32 %v64, %v62
    %v67 = vadd.f32 %v65, %v63
    %68 = vst [vmem:[#allocation2] sm:$0xff] %v66
    %69 = vst [vmem:[#allocation2 + $0x8] sm:$0xff] %v67
    // Predicated region
    $region22: #{tpu_custom_call.1} parent=1 // pred_check
      %p70 = pneg %p50
    $region23: #{tpu_custom_call.1} parent=1 // pred_check_branch
      %72 = sbr.rel (%p70) target = $region25
    $region24: #{tpu_custom_call.1} parent=1 // pred_region
      %v73 = vld [vmem:[#allocation2] sm:$0xff]
      %v74 = vld [vmem:[#allocation2 + $0x8] sm:$0xff]
      %77 = vst [vmem:[#allocation1] ss:$2 sm:$0xff] %v73
      %s78 = scalar_lea.vmem [#allocation1], 16
      %79 = vst [vmem:[%s78] ss:$2 sm:$0xff] %v74
      %v80 = vld.sshfl [vmem:[#allocation1] sm:$0xff pattern:$0x75316420]
      %v81 = vld.sshfl [vmem:[#allocation1 + $0x8] sm:$0xff pattern:$0x75316420]
      %v82 = vld.sshfl [vmem:[#allocation1 + $0x10] sm:$0xff pattern:$0x75316420]
      %v83 = vld.sshfl [vmem:[#allocation1 + $0x18] sm:$0xff pattern:$0x75316420]
      %vm88 = vcmask 1043456
      %v89 = vsel %vm88, %v80, 0.0
      %v90 = vsel %vm88, %v81, 0.0
      %v91 = vadd.f32 %v89, %v90
      %v92 = vsel %vm88, %v82, 0.0
      %v93 = vadd.f32 %v91, %v92
      %v94 = vsel %vm88, %v83, 0.0
      %v95 = vadd.f32 %v93, %v94
      %96 = vadd.xlane.f32.xlu0 %v95
      %v97 = vpop.xlane.xlu0 %96
      %v98 = vrot.slane %v97, 4
      %v99 = vadd.f32 %v97, %v98
      %v100 = vrot.slane %v99, 2
      %v101 = vadd.f32 %v99, %v100
      %v102 = vrot.slane %v101, 1
      %v103 = vadd.f32 %v101, %v102
      %s104 = vtos %v103
      %s105 = scalar_lea.smem [#allocation8], 0
      %106 = sst [smem:[%s105]] %s104
    $region25: #{tpu_custom_call.1} parent=1 // pred_fallthru
      _
    // Predicated region
    $region26: #{tpu_custom_call.1} parent=1 // pred_check
      _
    $region27: #{tpu_custom_call.1} parent=1 // pred_check_branch
      %108 = sbr.rel (0) target = $region29
    $region28: #{tpu_custom_call.1} parent=1 // pred_region
      %110 = vsyncadd [#allocation5], 0
      %s112 = sshll.u32 %s2, 4
      %s113 = int_to_ptr.hbm [resolvable:$true] %s112
      %115 = dma.smem_to_hbm [#allocation8], 16, %s113, [#allocation5]
    $region29: #{tpu_custom_call.1} parent=1 // pred_fallthru
      _
    // Predicated region
    $region30: #{tpu_custom_call.1} parent=1 // pred_check
      _
    $region31: #{tpu_custom_call.1} parent=1 // pred_check_branch
      %117 = sbr.rel (0) target = $region33
    $region32: #{tpu_custom_call.1} parent=1 // pred_region
      %119 = dma.done [#allocation5], 16
    $region33: #{tpu_custom_call.1} parent=1 // pred_fallthru
      _
    %120 = sfence
    %121 = vsyncpa [#allocation4], 1
    %122 = vsyncpa [#allocation7], 1
    %123 = vsyncpa [#allocation5], 1

</llo_original>
